<compile_context>
chip_gen: v6e
topology: v6e:2x2x1
jax: 0.10.0
libtpu: 0.0.40
codegen_flags: <defaults>
</compile_context>

<pallas_src>
import math

import jax
import jax.numpy as jnp
from jax import lax
from jax.experimental import pallas as pl
from jax.experimental.pallas import tpu as pltpu

DIM = 3                    # stack size (q, k, v)
EXPANSION = 4
HIDDEN = DIM * EXPANSION   # 12
LANES = 128
CHUNK = 16                 # rows per inner register-blocked step (2 f32 vregs)
INV_SQRT2 = 1.0 / math.sqrt(2.0)
GELU_TANH_K = 0.044715 * math.pi / 2.0   # cubic coeff after sqrt(2/pi) folding


def _round_up(x, m):
    return ((x + m - 1) // m) * m


def _make_kernel(use_tanh_gelu: bool):
    """Build the kernel body; the GELU variant is a trace-time choice."""

    def kernel(w1_ref, b1_ref, w2_ref, b2_ref, q_ref, k_ref, v_ref, o_ref):
        rows = q_ref.shape[0]                  # == tm (block rows)
        n_chunks = rows // CHUNK               # tm is a multiple of CHUNK

        # Hoist the tiny parameter reads (SMEM scalars) out of the row loop.
        w1 = [w1_ref[i] for i in range(DIM * HIDDEN)]
        b1 = [b1_ref[i] for i in range(HIDDEN)]
        w2 = [w2_ref[i] for i in range(HIDDEN)]
        b2 = b2_ref[0]

        def body(i, carry):
            r = pl.multiple_of(i * CHUNK, CHUNK)
            q = q_ref[pl.ds(r, CHUNK), :].astype(jnp.float32)
            k = k_ref[pl.ds(r, CHUNK), :].astype(jnp.float32)
            v = v_ref[pl.ds(r, CHUNK), :].astype(jnp.float32)

            # b2 folded into the accumulator init.
            acc = jnp.full((CHUNK, LANES), b2, dtype=jnp.float32)

            # Unrolled loop over the 12 hidden units; weights are SMEM scalars
            # with the activation scale pre-folded on the host:
            #   erf  path: w1,b1 *= 1/sqrt(2);   w2 *= 0.5*sqrt(2)
            #   tanh path: w1,b1 *= sqrt(2/pi);  w2 *= 0.5*sqrt(pi/2)
            for c in range(HIDDEN):
                h = (q * w1[DIM * c + 0]
                     + k * w1[DIM * c + 1]
                     + v * w1[DIM * c + 2]
                     + b1[c])
                if use_tanh_gelu:
                    inner = h * (1.0 + GELU_TANH_K * (h * h))
                    g = h * (1.0 + jnp.tanh(inner))      # tanh -> EUP slot
                else:
                    g = h * (1.0 + lax.erf(h))           # exact GELU (VPU poly)
                acc = acc + w2[c] * g

            o_ref[pl.ds(r, CHUNK), :] = acc.astype(o_ref.dtype)
            return carry

        lax.fori_loop(0, n_chunks, body, 0)

    return kernel


def _choose_tm(M, target=2048):
    """Pick a CHUNK-aligned row tile; prefer >=2 grid steps for larger inputs
    so both v7x TensorCores get work (grid axis is "parallel")."""
    tm = min(target, _round_up(M, CHUNK))
    # TODO(synk): make the >=2-step split generation-aware (skip on 1-TC chips).
    if M >= 256 and pl.cdiv(M, tm) < 2:
        tm = _round_up(pl.cdiv(M, 2), CHUNK)
    return max(tm, CHUNK)


def prompt_mixer(q, k, v, w1, b1, w2, b2, *, use_tanh_gelu=False, tm=None):
    """q, k, v: identical shapes (e.g. (B, N, D)).
    w1: (HIDDEN, DIM), b1: (HIDDEN,), w2: (HIDDEN,), b2: (1,)."""
    assert q.shape == k.shape == v.shape
    orig_shape = q.shape
    T = math.prod(orig_shape)

    M = pl.cdiv(T, LANES)                  # rows of the lane-dense (M, 128) view
    if tm is None:
        tm = _choose_tm(M)
    else:
        tm = max(_round_up(tm, CHUNK), CHUNK)
    M_in = max(M, tm)                      # block rows must not exceed array rows
    grid = pl.cdiv(M_in, tm)
    Tp = M_in * LANES

    def as_rows(x):
        xf = x.reshape(-1)
        if Tp > T:                         # only pads for ragged / tiny inputs
            xf = jnp.pad(xf, (0, Tp - T))
        return xf.reshape(M_in, LANES)     # pure reshape when Tp == T

    qf, kf, vf = as_rows(q), as_rows(k), as_rows(v)

    # Host-side constant folding of the tiny parameter tensors.
    if use_tanh_gelu:
        c0 = math.sqrt(2.0 / math.pi)
        w1_f = (w1 * c0).reshape(-1).astype(jnp.float32)       # (36,)
        b1_f = (b1 * c0).astype(jnp.float32)                   # (12,)
        w2_f = (w2 * (0.5 / c0)).astype(jnp.float32)           # (12,)
    else:
        w1_f = (w1 * INV_SQRT2).reshape(-1).astype(jnp.float32)
        b1_f = (b1 * INV_SQRT2).astype(jnp.float32)
        w2_f = (w2 * (0.5 * math.sqrt(2.0))).astype(jnp.float32)
    b2_f = b2.astype(jnp.float32)                              # (1,)

    row_spec = pl.BlockSpec((tm, LANES), lambda i: (i, 0))
    smem_spec = pl.BlockSpec(memory_space=pltpu.MemorySpace.SMEM)

    n_elem = M_in * LANES
    per_hidden = 10 if use_tanh_gelu else 40   # rough elementwise-op count
    cost = pl.CostEstimate(
        flops=n_elem * HIDDEN * per_hidden,
        transcendentals=n_elem * HIDDEN if use_tanh_gelu else 0,
        bytes_accessed=n_elem * 4 * jnp.dtype(q.dtype).itemsize,
    )

    out = pl.pallas_call(
        _make_kernel(use_tanh_gelu),
        out_shape=jax.ShapeDtypeStruct((M_in, LANES), q.dtype),
        grid=(grid,),
        in_specs=[smem_spec, smem_spec, smem_spec, smem_spec,
                  row_spec, row_spec, row_spec],
        out_specs=row_spec,
        compiler_params=pltpu.CompilerParams(
            dimension_semantics=("parallel",)),
        cost_estimate=cost,
    )(w1_f, b1_f, w2_f, b2_f, qf, kf, vf)

    if Tp == T:
        return out.reshape(orig_shape)           # free reshape
    return out.reshape(-1)[:T].reshape(orig_shape)


def prompt_mixer_reference(q, k, v, w1, b1, w2, b2, use_tanh_gelu=False):
    qk = jnp.stack([q, k, v], axis=-1)                         # (..., 3)
    h = qk @ w1.T + b1                                         # (..., 12)
    if use_tanh_gelu:
        h = 0.5 * h * (1.0 + jnp.tanh(
            math.sqrt(2.0 / math.pi) * (h + 0.044715 * h ** 3)))
    else:
        h = 0.5 * h * (1.0 + lax.erf(h * INV_SQRT2))           # exact GELU
    return h @ w2 + b2[0]                                      # (...,)


if __name__ == "__main__":
    key = jax.random.PRNGKey(0)
    kq, kk, kv, kw1, kb1, kw2, kb2 = jax.random.split(key, 7)

    # Deterministic params mimicking nn.Linear init (uniform(-1/sqrt(fan_in), +)).
    lim1 = 1.0 / math.sqrt(DIM)
    lim2 = 1.0 / math.sqrt(HIDDEN)
    w1 = jax.random.uniform(kw1, (HIDDEN, DIM), jnp.float32, -lim1, lim1)
    b1 = jax.random.uniform(kb1, (HIDDEN,), jnp.float32, -lim1, lim1)
    w2 = jax.random.uniform(kw2, (HIDDEN,), jnp.float32, -lim2, lim2)
    b2 = jax.random.uniform(kb2, (1,), jnp.float32, -lim2, lim2)

    def check(shape, use_tanh_gelu):
        q = jax.random.normal(kq, shape, jnp.float32)
        k = jax.random.normal(kk, shape, jnp.float32)
        v = jax.random.normal(kv, shape, jnp.float32)
        out = jax.block_until_ready(
            prompt_mixer(q, k, v, w1, b1, w2, b2, use_tanh_gelu=use_tanh_gelu))
        ref = prompt_mixer_reference(q, k, v, w1, b1, w2, b2,
                                     use_tanh_gelu=use_tanh_gelu)
        assert out.shape == shape
        assert jnp.allclose(out, ref, atol=1e-5, rtol=1e-5), (
            f"mismatch vs reference shape={shape} tanh={use_tanh_gelu}")

    # 1) small "nice" shape (single block, exact-erf GELU = PyTorch default).
    check((2, 8, 32), use_tanh_gelu=False)
    # 2) awkward shape: exercises the ragged lane/row padding + tail slice.
    check((3, 17, 50), use_tanh_gelu=False)
    # 3) numel % 128 == 0: pure-reshape (no pad copy), 2-step parallel grid.
    check((4, 128, 128), use_tanh_gelu=False)
    # 4) EUP-routed tanh-approx GELU path (behind the flag).
    check((4, 128, 128), use_tanh_gelu=True)

    print("KERNEL_OK")
</pallas_src>

<mosaic_0001>
module attributes {stable_mosaic.version = 11 : i64} {
  func.func @kernel(%arg0: i32, %arg1: memref<36xf32, #tpu.memory_space<smem>>, %arg2: memref<12xf32, #tpu.memory_space<smem>>, %arg3: memref<12xf32, #tpu.memory_space<smem>>, %arg4: memref<1xf32, #tpu.memory_space<smem>>, %arg5: memref<16x128xf32, #tpu.memory_space<vmem>>, %arg6: memref<16x128xf32, #tpu.memory_space<vmem>>, %arg7: memref<16x128xf32, #tpu.memory_space<vmem>>, %arg8: memref<16x128xf32, #tpu.memory_space<vmem>>) attributes {dimension_semantics = [#tpu.dimension_semantics<parallel>], iteration_bounds = array<i64: 1>, scalar_prefetch = 0 : i64, scratch_operands = 0 : i64, tpu.core_type = #tpu.core_type<tc>, window_params = [{transform_indices = @transform_0, window_bounds = array<i64: 36>}, {transform_indices = @transform_1, window_bounds = array<i64: 12>}, {transform_indices = @transform_2, window_bounds = array<i64: 12>}, {transform_indices = @transform_3, window_bounds = array<i64: 1>}, {transform_indices = @transform_4, window_bounds = array<i64: 16, 128>}, {transform_indices = @transform_5, window_bounds = array<i64: 16, 128>}, {transform_indices = @transform_6, window_bounds = array<i64: 16, 128>}, {transform_indices = @transform_7, window_bounds = array<i64: 16, 128>}]} {
    %c0 = arith.constant 0 : index
    %0 = memref.load %arg1[%c0] : memref<36xf32, #tpu.memory_space<smem>>
    %c1 = arith.constant 1 : index
    %1 = memref.load %arg1[%c1] : memref<36xf32, #tpu.memory_space<smem>>
    %c2 = arith.constant 2 : index
    %2 = memref.load %arg1[%c2] : memref<36xf32, #tpu.memory_space<smem>>
    %c3 = arith.constant 3 : index
    %3 = memref.load %arg1[%c3] : memref<36xf32, #tpu.memory_space<smem>>
    %c4 = arith.constant 4 : index
    %4 = memref.load %arg1[%c4] : memref<36xf32, #tpu.memory_space<smem>>
    %c5 = arith.constant 5 : index
    %5 = memref.load %arg1[%c5] : memref<36xf32, #tpu.memory_space<smem>>
    %c6 = arith.constant 6 : index
    %6 = memref.load %arg1[%c6] : memref<36xf32, #tpu.memory_space<smem>>
    %c7 = arith.constant 7 : index
    %7 = memref.load %arg1[%c7] : memref<36xf32, #tpu.memory_space<smem>>
    %c8 = arith.constant 8 : index
    %8 = memref.load %arg1[%c8] : memref<36xf32, #tpu.memory_space<smem>>
    %c9 = arith.constant 9 : index
    %9 = memref.load %arg1[%c9] : memref<36xf32, #tpu.memory_space<smem>>
    %c10 = arith.constant 10 : index
    %10 = memref.load %arg1[%c10] : memref<36xf32, #tpu.memory_space<smem>>
    %c11 = arith.constant 11 : index
    %11 = memref.load %arg1[%c11] : memref<36xf32, #tpu.memory_space<smem>>
    %c12 = arith.constant 12 : index
    %12 = memref.load %arg1[%c12] : memref<36xf32, #tpu.memory_space<smem>>
    %c13 = arith.constant 13 : index
    %13 = memref.load %arg1[%c13] : memref<36xf32, #tpu.memory_space<smem>>
    %c14 = arith.constant 14 : index
    %14 = memref.load %arg1[%c14] : memref<36xf32, #tpu.memory_space<smem>>
    %c15 = arith.constant 15 : index
    %15 = memref.load %arg1[%c15] : memref<36xf32, #tpu.memory_space<smem>>
    %c16 = arith.constant 16 : index
    %16 = memref.load %arg1[%c16] : memref<36xf32, #tpu.memory_space<smem>>
    %c17 = arith.constant 17 : index
    %17 = memref.load %arg1[%c17] : memref<36xf32, #tpu.memory_space<smem>>
    %c18 = arith.constant 18 : index
    %18 = memref.load %arg1[%c18] : memref<36xf32, #tpu.memory_space<smem>>
    %c19 = arith.constant 19 : index
    %19 = memref.load %arg1[%c19] : memref<36xf32, #tpu.memory_space<smem>>
    %c20 = arith.constant 20 : index
    %20 = memref.load %arg1[%c20] : memref<36xf32, #tpu.memory_space<smem>>
    %c21 = arith.constant 21 : index
    %21 = memref.load %arg1[%c21] : memref<36xf32, #tpu.memory_space<smem>>
    %c22 = arith.constant 22 : index
    %22 = memref.load %arg1[%c22] : memref<36xf32, #tpu.memory_space<smem>>
    %c23 = arith.constant 23 : index
    %23 = memref.load %arg1[%c23] : memref<36xf32, #tpu.memory_space<smem>>
    %c24 = arith.constant 24 : index
    %24 = memref.load %arg1[%c24] : memref<36xf32, #tpu.memory_space<smem>>
    %c25 = arith.constant 25 : index
    %25 = memref.load %arg1[%c25] : memref<36xf32, #tpu.memory_space<smem>>
    %c26 = arith.constant 26 : index
    %26 = memref.load %arg1[%c26] : memref<36xf32, #tpu.memory_space<smem>>
    %c27 = arith.constant 27 : index
    %27 = memref.load %arg1[%c27] : memref<36xf32, #tpu.memory_space<smem>>
    %c28 = arith.constant 28 : index
    %28 = memref.load %arg1[%c28] : memref<36xf32, #tpu.memory_space<smem>>
    %c29 = arith.constant 29 : index
    %29 = memref.load %arg1[%c29] : memref<36xf32, #tpu.memory_space<smem>>
    %c30 = arith.constant 30 : index
    %30 = memref.load %arg1[%c30] : memref<36xf32, #tpu.memory_space<smem>>
    %c31 = arith.constant 31 : index
    %31 = memref.load %arg1[%c31] : memref<36xf32, #tpu.memory_space<smem>>
    %c32 = arith.constant 32 : index
    %32 = memref.load %arg1[%c32] : memref<36xf32, #tpu.memory_space<smem>>
    %c33 = arith.constant 33 : index
    %33 = memref.load %arg1[%c33] : memref<36xf32, #tpu.memory_space<smem>>
    %c34 = arith.constant 34 : index
    %34 = memref.load %arg1[%c34] : memref<36xf32, #tpu.memory_space<smem>>
    %c35 = arith.constant 35 : index
    %35 = memref.load %arg1[%c35] : memref<36xf32, #tpu.memory_space<smem>>
    %c0_0 = arith.constant 0 : index
    %36 = memref.load %arg2[%c0_0] : memref<12xf32, #tpu.memory_space<smem>>
    %c1_1 = arith.constant 1 : index
    %37 = memref.load %arg2[%c1_1] : memref<12xf32, #tpu.memory_space<smem>>
    %c2_2 = arith.constant 2 : index
    %38 = memref.load %arg2[%c2_2] : memref<12xf32, #tpu.memory_space<smem>>
    %c3_3 = arith.constant 3 : index
    %39 = memref.load %arg2[%c3_3] : memref<12xf32, #tpu.memory_space<smem>>
    %c4_4 = arith.constant 4 : index
    %40 = memref.load %arg2[%c4_4] : memref<12xf32, #tpu.memory_space<smem>>
    %c5_5 = arith.constant 5 : index
    %41 = memref.load %arg2[%c5_5] : memref<12xf32, #tpu.memory_space<smem>>
    %c6_6 = arith.constant 6 : index
    %42 = memref.load %arg2[%c6_6] : memref<12xf32, #tpu.memory_space<smem>>
    %c7_7 = arith.constant 7 : index
    %43 = memref.load %arg2[%c7_7] : memref<12xf32, #tpu.memory_space<smem>>
    %c8_8 = arith.constant 8 : index
    %44 = memref.load %arg2[%c8_8] : memref<12xf32, #tpu.memory_space<smem>>
    %c9_9 = arith.constant 9 : index
    %45 = memref.load %arg2[%c9_9] : memref<12xf32, #tpu.memory_space<smem>>
    %c10_10 = arith.constant 10 : index
    %46 = memref.load %arg2[%c10_10] : memref<12xf32, #tpu.memory_space<smem>>
    %c11_11 = arith.constant 11 : index
    %47 = memref.load %arg2[%c11_11] : memref<12xf32, #tpu.memory_space<smem>>
    %c0_12 = arith.constant 0 : index
    %48 = memref.load %arg3[%c0_12] : memref<12xf32, #tpu.memory_space<smem>>
    %c1_13 = arith.constant 1 : index
    %49 = memref.load %arg3[%c1_13] : memref<12xf32, #tpu.memory_space<smem>>
    %c2_14 = arith.constant 2 : index
    %50 = memref.load %arg3[%c2_14] : memref<12xf32, #tpu.memory_space<smem>>
    %c3_15 = arith.constant 3 : index
    %51 = memref.load %arg3[%c3_15] : memref<12xf32, #tpu.memory_space<smem>>
    %c4_16 = arith.constant 4 : index
    %52 = memref.load %arg3[%c4_16] : memref<12xf32, #tpu.memory_space<smem>>
    %c5_17 = arith.constant 5 : index
    %53 = memref.load %arg3[%c5_17] : memref<12xf32, #tpu.memory_space<smem>>
    %c6_18 = arith.constant 6 : index
    %54 = memref.load %arg3[%c6_18] : memref<12xf32, #tpu.memory_space<smem>>
    %c7_19 = arith.constant 7 : index
    %55 = memref.load %arg3[%c7_19] : memref<12xf32, #tpu.memory_space<smem>>
    %c8_20 = arith.constant 8 : index
    %56 = memref.load %arg3[%c8_20] : memref<12xf32, #tpu.memory_space<smem>>
    %c9_21 = arith.constant 9 : index
    %57 = memref.load %arg3[%c9_21] : memref<12xf32, #tpu.memory_space<smem>>
    %c10_22 = arith.constant 10 : index
    %58 = memref.load %arg3[%c10_22] : memref<12xf32, #tpu.memory_space<smem>>
    %c11_23 = arith.constant 11 : index
    %59 = memref.load %arg3[%c11_23] : memref<12xf32, #tpu.memory_space<smem>>
    %c0_24 = arith.constant 0 : index
    %60 = memref.load %arg4[%c0_24] : memref<1xf32, #tpu.memory_space<smem>>
    %c0_i32 = arith.constant 0 : i32
    %c16_i32 = arith.constant 16 : i32
    %61 = arith.muli %c0_i32, %c16_i32 : i32
    %62 = tpu.assume_multiple %61, 16 : i32
    %63 = arith.index_cast %62 : i32 to index
    %c0_25 = arith.constant 0 : index
    %64 = vector.load %arg5[%63, %c0_25] : memref<16x128xf32, #tpu.memory_space<vmem>>, vector<16x128xf32>
    %65 = arith.index_cast %62 : i32 to index
    %c0_26 = arith.constant 0 : index
    %66 = vector.load %arg6[%65, %c0_26] : memref<16x128xf32, #tpu.memory_space<vmem>>, vector<16x128xf32>
    %67 = arith.index_cast %62 : i32 to index
    %c0_27 = arith.constant 0 : index
    %68 = vector.load %arg7[%67, %c0_27] : memref<16x128xf32, #tpu.memory_space<vmem>>, vector<16x128xf32>
    %69 = vector.broadcast %60 : f32 to vector<16x128xf32>
    %70 = vector.broadcast %0 : f32 to vector<16x128xf32>
    %71 = arith.mulf %64, %70 : vector<16x128xf32>
    %72 = vector.broadcast %1 : f32 to vector<16x128xf32>
    %73 = arith.mulf %66, %72 : vector<16x128xf32>
    %74 = arith.addf %71, %73 : vector<16x128xf32>
    %75 = vector.broadcast %2 : f32 to vector<16x128xf32>
    %76 = arith.mulf %68, %75 : vector<16x128xf32>
    %77 = arith.addf %74, %76 : vector<16x128xf32>
    %78 = vector.broadcast %36 : f32 to vector<16x128xf32>
    %79 = arith.addf %77, %78 : vector<16x128xf32>
    %80 = math.erf %79 : vector<16x128xf32>
    %cst = arith.constant 1.000000e+00 : f32
    %81 = vector.broadcast %cst : f32 to vector<16x128xf32>
    %82 = arith.addf %81, %80 : vector<16x128xf32>
    %83 = arith.mulf %79, %82 : vector<16x128xf32>
    %84 = vector.broadcast %48 : f32 to vector<16x128xf32>
    %85 = arith.mulf %84, %83 : vector<16x128xf32>
    %86 = arith.addf %69, %85 : vector<16x128xf32>
    %87 = vector.broadcast %3 : f32 to vector<16x128xf32>
    %88 = arith.mulf %64, %87 : vector<16x128xf32>
    %89 = vector.broadcast %4 : f32 to vector<16x128xf32>
    %90 = arith.mulf %66, %89 : vector<16x128xf32>
    %91 = arith.addf %88, %90 : vector<16x128xf32>
    %92 = vector.broadcast %5 : f32 to vector<16x128xf32>
    %93 = arith.mulf %68, %92 : vector<16x128xf32>
    %94 = arith.addf %91, %93 : vector<16x128xf32>
    %95 = vector.broadcast %37 : f32 to vector<16x128xf32>
    %96 = arith.addf %94, %95 : vector<16x128xf32>
    %97 = math.erf %96 : vector<16x128xf32>
    %cst_28 = arith.constant 1.000000e+00 : f32
    %98 = vector.broadcast %cst_28 : f32 to vector<16x128xf32>
    %99 = arith.addf %98, %97 : vector<16x128xf32>
    %100 = arith.mulf %96, %99 : vector<16x128xf32>
    %101 = vector.broadcast %49 : f32 to vector<16x128xf32>
    %102 = arith.mulf %101, %100 : vector<16x128xf32>
    %103 = arith.addf %86, %102 : vector<16x128xf32>
    %104 = vector.broadcast %6 : f32 to vector<16x128xf32>
    %105 = arith.mulf %64, %104 : vector<16x128xf32>
    %106 = vector.broadcast %7 : f32 to vector<16x128xf32>
    %107 = arith.mulf %66, %106 : vector<16x128xf32>
    %108 = arith.addf %105, %107 : vector<16x128xf32>
    %109 = vector.broadcast %8 : f32 to vector<16x128xf32>
    %110 = arith.mulf %68, %109 : vector<16x128xf32>
    %111 = arith.addf %108, %110 : vector<16x128xf32>
    %112 = vector.broadcast %38 : f32 to vector<16x128xf32>
    %113 = arith.addf %111, %112 : vector<16x128xf32>
    %114 = math.erf %113 : vector<16x128xf32>
    %cst_29 = arith.constant 1.000000e+00 : f32
    %115 = vector.broadcast %cst_29 : f32 to vector<16x128xf32>
    %116 = arith.addf %115, %114 : vector<16x128xf32>
    %117 = arith.mulf %113, %116 : vector<16x128xf32>
    %118 = vector.broadcast %50 : f32 to vector<16x128xf32>
    %119 = arith.mulf %118, %117 : vector<16x128xf32>
    %120 = arith.addf %103, %119 : vector<16x128xf32>
    %121 = vector.broadcast %9 : f32 to vector<16x128xf32>
    %122 = arith.mulf %64, %121 : vector<16x128xf32>
    %123 = vector.broadcast %10 : f32 to vector<16x128xf32>
    %124 = arith.mulf %66, %123 : vector<16x128xf32>
    %125 = arith.addf %122, %124 : vector<16x128xf32>
    %126 = vector.broadcast %11 : f32 to vector<16x128xf32>
    %127 = arith.mulf %68, %126 : vector<16x128xf32>
    %128 = arith.addf %125, %127 : vector<16x128xf32>
    %129 = vector.broadcast %39 : f32 to vector<16x128xf32>
    %130 = arith.addf %128, %129 : vector<16x128xf32>
    %131 = math.erf %130 : vector<16x128xf32>
    %cst_30 = arith.constant 1.000000e+00 : f32
    %132 = vector.broadcast %cst_30 : f32 to vector<16x128xf32>
    %133 = arith.addf %132, %131 : vector<16x128xf32>
    %134 = arith.mulf %130, %133 : vector<16x128xf32>
    %135 = vector.broadcast %51 : f32 to vector<16x128xf32>
    %136 = arith.mulf %135, %134 : vector<16x128xf32>
    %137 = arith.addf %120, %136 : vector<16x128xf32>
    %138 = vector.broadcast %12 : f32 to vector<16x128xf32>
    %139 = arith.mulf %64, %138 : vector<16x128xf32>
    %140 = vector.broadcast %13 : f32 to vector<16x128xf32>
    %141 = arith.mulf %66, %140 : vector<16x128xf32>
    %142 = arith.addf %139, %141 : vector<16x128xf32>
    %143 = vector.broadcast %14 : f32 to vector<16x128xf32>
    %144 = arith.mulf %68, %143 : vector<16x128xf32>
    %145 = arith.addf %142, %144 : vector<16x128xf32>
    %146 = vector.broadcast %40 : f32 to vector<16x128xf32>
    %147 = arith.addf %145, %146 : vector<16x128xf32>
    %148 = math.erf %147 : vector<16x128xf32>
    %cst_31 = arith.constant 1.000000e+00 : f32
    %149 = vector.broadcast %cst_31 : f32 to vector<16x128xf32>
    %150 = arith.addf %149, %148 : vector<16x128xf32>
    %151 = arith.mulf %147, %150 : vector<16x128xf32>
    %152 = vector.broadcast %52 : f32 to vector<16x128xf32>
    %153 = arith.mulf %152, %151 : vector<16x128xf32>
    %154 = arith.addf %137, %153 : vector<16x128xf32>
    %155 = vector.broadcast %15 : f32 to vector<16x128xf32>
    %156 = arith.mulf %64, %155 : vector<16x128xf32>
    %157 = vector.broadcast %16 : f32 to vector<16x128xf32>
    %158 = arith.mulf %66, %157 : vector<16x128xf32>
    %159 = arith.addf %156, %158 : vector<16x128xf32>
    %160 = vector.broadcast %17 : f32 to vector<16x128xf32>
    %161 = arith.mulf %68, %160 : vector<16x128xf32>
    %162 = arith.addf %159, %161 : vector<16x128xf32>
    %163 = vector.broadcast %41 : f32 to vector<16x128xf32>
    %164 = arith.addf %162, %163 : vector<16x128xf32>
    %165 = math.erf %164 : vector<16x128xf32>
    %cst_32 = arith.constant 1.000000e+00 : f32
    %166 = vector.broadcast %cst_32 : f32 to vector<16x128xf32>
    %167 = arith.addf %166, %165 : vector<16x128xf32>
    %168 = arith.mulf %164, %167 : vector<16x128xf32>
    %169 = vector.broadcast %53 : f32 to vector<16x128xf32>
    %170 = arith.mulf %169, %168 : vector<16x128xf32>
    %171 = arith.addf %154, %170 : vector<16x128xf32>
    %172 = vector.broadcast %18 : f32 to vector<16x128xf32>
    %173 = arith.mulf %64, %172 : vector<16x128xf32>
    %174 = vector.broadcast %19 : f32 to vector<16x128xf32>
    %175 = arith.mulf %66, %174 : vector<16x128xf32>
    %176 = arith.addf %173, %175 : vector<16x128xf32>
    %177 = vector.broadcast %20 : f32 to vector<16x128xf32>
    %178 = arith.mulf %68, %177 : vector<16x128xf32>
    %179 = arith.addf %176, %178 : vector<16x128xf32>
    %180 = vector.broadcast %42 : f32 to vector<16x128xf32>
    %181 = arith.addf %179, %180 : vector<16x128xf32>
    %182 = math.erf %181 : vector<16x128xf32>
    %cst_33 = arith.constant 1.000000e+00 : f32
    %183 = vector.broadcast %cst_33 : f32 to vector<16x128xf32>
    %184 = arith.addf %183, %182 : vector<16x128xf32>
    %185 = arith.mulf %181, %184 : vector<16x128xf32>
    %186 = vector.broadcast %54 : f32 to vector<16x128xf32>
    %187 = arith.mulf %186, %185 : vector<16x128xf32>
    %188 = arith.addf %171, %187 : vector<16x128xf32>
    %189 = vector.broadcast %21 : f32 to vector<16x128xf32>
    %190 = arith.mulf %64, %189 : vector<16x128xf32>
    %191 = vector.broadcast %22 : f32 to vector<16x128xf32>
    %192 = arith.mulf %66, %191 : vector<16x128xf32>
    %193 = arith.addf %190, %192 : vector<16x128xf32>
    %194 = vector.broadcast %23 : f32 to vector<16x128xf32>
    %195 = arith.mulf %68, %194 : vector<16x128xf32>
    %196 = arith.addf %193, %195 : vector<16x128xf32>
    %197 = vector.broadcast %43 : f32 to vector<16x128xf32>
    %198 = arith.addf %196, %197 : vector<16x128xf32>
    %199 = math.erf %198 : vector<16x128xf32>
    %cst_34 = arith.constant 1.000000e+00 : f32
    %200 = vector.broadcast %cst_34 : f32 to vector<16x128xf32>
    %201 = arith.addf %200, %199 : vector<16x128xf32>
    %202 = arith.mulf %198, %201 : vector<16x128xf32>
    %203 = vector.broadcast %55 : f32 to vector<16x128xf32>
    %204 = arith.mulf %203, %202 : vector<16x128xf32>
    %205 = arith.addf %188, %204 : vector<16x128xf32>
    %206 = vector.broadcast %24 : f32 to vector<16x128xf32>
    %207 = arith.mulf %64, %206 : vector<16x128xf32>
    %208 = vector.broadcast %25 : f32 to vector<16x128xf32>
    %209 = arith.mulf %66, %208 : vector<16x128xf32>
    %210 = arith.addf %207, %209 : vector<16x128xf32>
    %211 = vector.broadcast %26 : f32 to vector<16x128xf32>
    %212 = arith.mulf %68, %211 : vector<16x128xf32>
    %213 = arith.addf %210, %212 : vector<16x128xf32>
    %214 = vector.broadcast %44 : f32 to vector<16x128xf32>
    %215 = arith.addf %213, %214 : vector<16x128xf32>
    %216 = math.erf %215 : vector<16x128xf32>
    %cst_35 = arith.constant 1.000000e+00 : f32
    %217 = vector.broadcast %cst_35 : f32 to vector<16x128xf32>
    %218 = arith.addf %217, %216 : vector<16x128xf32>
    %219 = arith.mulf %215, %218 : vector<16x128xf32>
    %220 = vector.broadcast %56 : f32 to vector<16x128xf32>
    %221 = arith.mulf %220, %219 : vector<16x128xf32>
    %222 = arith.addf %205, %221 : vector<16x128xf32>
    %223 = vector.broadcast %27 : f32 to vector<16x128xf32>
    %224 = arith.mulf %64, %223 : vector<16x128xf32>
    %225 = vector.broadcast %28 : f32 to vector<16x128xf32>
    %226 = arith.mulf %66, %225 : vector<16x128xf32>
    %227 = arith.addf %224, %226 : vector<16x128xf32>
    %228 = vector.broadcast %29 : f32 to vector<16x128xf32>
    %229 = arith.mulf %68, %228 : vector<16x128xf32>
    %230 = arith.addf %227, %229 : vector<16x128xf32>
    %231 = vector.broadcast %45 : f32 to vector<16x128xf32>
    %232 = arith.addf %230, %231 : vector<16x128xf32>
    %233 = math.erf %232 : vector<16x128xf32>
    %cst_36 = arith.constant 1.000000e+00 : f32
    %234 = vector.broadcast %cst_36 : f32 to vector<16x128xf32>
    %235 = arith.addf %234, %233 : vector<16x128xf32>
    %236 = arith.mulf %232, %235 : vector<16x128xf32>
    %237 = vector.broadcast %57 : f32 to vector<16x128xf32>
    %238 = arith.mulf %237, %236 : vector<16x128xf32>
    %239 = arith.addf %222, %238 : vector<16x128xf32>
    %240 = vector.broadcast %30 : f32 to vector<16x128xf32>
    %241 = arith.mulf %64, %240 : vector<16x128xf32>
    %242 = vector.broadcast %31 : f32 to vector<16x128xf32>
    %243 = arith.mulf %66, %242 : vector<16x128xf32>
    %244 = arith.addf %241, %243 : vector<16x128xf32>
    %245 = vector.broadcast %32 : f32 to vector<16x128xf32>
    %246 = arith.mulf %68, %245 : vector<16x128xf32>
    %247 = arith.addf %244, %246 : vector<16x128xf32>
    %248 = vector.broadcast %46 : f32 to vector<16x128xf32>
    %249 = arith.addf %247, %248 : vector<16x128xf32>
    %250 = math.erf %249 : vector<16x128xf32>
    %cst_37 = arith.constant 1.000000e+00 : f32
    %251 = vector.broadcast %cst_37 : f32 to vector<16x128xf32>
    %252 = arith.addf %251, %250 : vector<16x128xf32>
    %253 = arith.mulf %249, %252 : vector<16x128xf32>
    %254 = vector.broadcast %58 : f32 to vector<16x128xf32>
    %255 = arith.mulf %254, %253 : vector<16x128xf32>
    %256 = arith.addf %239, %255 : vector<16x128xf32>
    %257 = vector.broadcast %33 : f32 to vector<16x128xf32>
    %258 = arith.mulf %64, %257 : vector<16x128xf32>
    %259 = vector.broadcast %34 : f32 to vector<16x128xf32>
    %260 = arith.mulf %66, %259 : vector<16x128xf32>
    %261 = arith.addf %258, %260 : vector<16x128xf32>
    %262 = vector.broadcast %35 : f32 to vector<16x128xf32>
    %263 = arith.mulf %68, %262 : vector<16x128xf32>
    %264 = arith.addf %261, %263 : vector<16x128xf32>
    %265 = vector.broadcast %47 : f32 to vector<16x128xf32>
    %266 = arith.addf %264, %265 : vector<16x128xf32>
    %267 = math.erf %266 : vector<16x128xf32>
    %cst_38 = arith.constant 1.000000e+00 : f32
    %268 = vector.broadcast %cst_38 : f32 to vector<16x128xf32>
    %269 = arith.addf %268, %267 : vector<16x128xf32>
    %270 = arith.mulf %266, %269 : vector<16x128xf32>
    %271 = vector.broadcast %59 : f32 to vector<16x128xf32>
    %272 = arith.mulf %271, %270 : vector<16x128xf32>
    %273 = arith.addf %256, %272 : vector<16x128xf32>
    %274 = arith.index_cast %62 : i32 to index
    %c0_39 = arith.constant 0 : index
    %275 = vector.load %arg8[%274, %c0_39] : memref<16x128xf32, #tpu.memory_space<vmem>>, vector<16x128xf32>
    tpu.vector_store %arg8[%274, %c0_39], %273 {strides = array<i32>} : memref<16x128xf32, #tpu.memory_space<vmem>>, vector<16x128xf32>,
    %c1_i32 = arith.constant 1 : i32
    return
  }
  func.func @transform_0(%arg0: i32) -> i32 {
    %c0_i32 = arith.constant 0 : i32
    %c0_i32_0 = arith.constant 0 : i32
    return %c0_i32 : i32
  }
  func.func @transform_1(%arg0: i32) -> i32 {
    %c0_i32 = arith.constant 0 : i32
    %c0_i32_0 = arith.constant 0 : i32
    return %c0_i32 : i32
  }
  func.func @transform_2(%arg0: i32) -> i32 {
    %c0_i32 = arith.constant 0 : i32
    %c0_i32_0 = arith.constant 0 : i32
    return %c0_i32 : i32
  }
  func.func @transform_3(%arg0: i32) -> i32 {
    %c0_i32 = arith.constant 0 : i32
    %c0_i32_0 = arith.constant 0 : i32
    return %c0_i32 : i32
  }
  func.func @transform_4(%arg0: i32) -> (i32, i32) {
    %c0_i32 = arith.constant 0 : i32
    %c0_i32_0 = arith.constant 0 : i32
    return %arg0, %c0_i32 : i32, i32
  }
  func.func @transform_5(%arg0: i32) -> (i32, i32) {
    %c0_i32 = arith.constant 0 : i32
    %c0_i32_0 = arith.constant 0 : i32
    return %arg0, %c0_i32 : i32, i32
  }
  func.func @transform_6(%arg0: i32) -> (i32, i32) {
    %c0_i32 = arith.constant 0 : i32
    %c0_i32_0 = arith.constant 0 : i32
    return %arg0, %c0_i32 : i32, i32
  }
  func.func @transform_7(%arg0: i32) -> (i32, i32) {
    %c0_i32 = arith.constant 0 : i32
    %c0_i32_0 = arith.constant 0 : i32
    return %arg0, %c0_i32 : i32, i32
  }
}

</mosaic_0001>

<llo_original>
// kernel: tpu_custom_call.1
$region0: #{tpu_custom_call.1}
  #allocation0 [shape = 'u32[]', space=smem, size = 0x4, offset = 0x4, fixed_abs, tag = 'smem constant byte address 0x4 - core index']
  #allocation1 [shape = 'u32[144,128]{1,0:T(1,128)}', space=vmem, size = 0x12000, scoped, tag = 'internal scratch']
  #allocation2 [shape = 'f32[1]{0:T(128)S(6)}', space=smem, size = 0x200, scoped, tag = 'scoped memory for tpu_custom_call.1']
  %s0 = inlined_call_operand.vmem [shape: f32[36], index: 0, kind: input, shape index: {}]
  %s1 = inlined_call_operand.vmem [shape: f32[12], index: 1, kind: input, shape index: {}]
  %s2 = inlined_call_operand.vmem [shape: f32[12], index: 2, kind: input, shape index: {}]
  %s3 = inlined_call_operand.<no memory space> [shape: f32[1], index: 3, kind: input, shape index: {}]
  %s4 = inlined_call_operand.hbm [shape: f32[16,128], index: 4, kind: input, shape index: {}]
  %s5 = inlined_call_operand.hbm [shape: f32[16,128], index: 5, kind: input, shape index: {}]
  %s6 = inlined_call_operand.hbm [shape: f32[16,128], index: 6, kind: input, shape index: {}]
  %s7 = inlined_call_operand.hbm [shape: f32[16,128], index: 7, kind: output, shape index: {}]
  %s8 = sld [smem:[#allocation0]]
  $region62: #{tpu_custom_call.1} parent=0
    _
  %s10 = ssub.s32 1, %s8
  %s11 = scalar_select 0, %s10, %s8
  %12 = sst [smem:[#allocation2]] %s3
  $region1: #{tpu_custom_call.1} parent=0
    #allocation3 [shape = 'u8[512]{0}', space=smem, size = 0x200, scoped, tag = 'input window, operand 0, single buffered']
    #allocation4 [shape = 's32[1]{0}', space=sflag, size = 0x4, scoped, tag = 'scoped memory for tpu_custom_call.1']
    #allocation5 [shape = 's32[1]{0}', space=sflag, size = 0x4, scoped, tag = 'scoped memory for tpu_custom_call.1']
    #allocation6 [shape = 's32[1]{0}', space=sflag, size = 0x4, scoped, tag = 'scoped memory for tpu_custom_call.1']
    #allocation7 [shape = 'u8[512]{0}', space=smem, size = 0x200, scoped, tag = 'input window, operand 1, single buffered']
    #allocation8 [shape = 's32[1]{0}', space=sflag, size = 0x4, scoped, tag = 'scoped memory for tpu_custom_call.1']
    #allocation9 [shape = 'u8[512]{0}', space=smem, size = 0x200, scoped, tag = 'input window, operand 2, single buffered']
    #allocation10 [shape = 'u8[8192]{0}', space=vmem, size = 0x2000, scoped, tag = 'input window, operand 4, single buffered']
    #allocation11 [shape = 'u8[8192]{0}', space=vmem, size = 0x2000, scoped, tag = 'input window, operand 5, single buffered']
    #allocation12 [shape = 's32[1]{0}', space=sflag, size = 0x4, scoped, tag = 'scoped memory for tpu_custom_call.1']
    #allocation13 [shape = 'u8[8192]{0}', space=vmem, size = 0x2000, scoped, tag = 'input window, operand 6, single buffered']
    #allocation14 [shape = 'u8[8192]{0}', space=vmem, size = 0x2000, scoped, tag = 'output window, operand 0, single buffered']
    %13 = vsyncpa [#allocation6], 0
    %14 = vsyncpa [#allocation8], 0
    %15 = vsyncpa [#allocation4], 0
    %16 = vsyncpa [#allocation12], 0
    %17 = vsyncpa [#allocation5], 0
    // Predicated region
    $region2: #{tpu_custom_call.1} parent=1 // pred_check
      _
    $region3: #{tpu_custom_call.1} parent=1 // pred_check_branch
      %19 = sbr.rel (0) target = $region5
    $region4: #{tpu_custom_call.1} parent=1 // pred_region
      %s21 = ssub.s32 16, 16
      %22 = vsyncadd [#allocation6], %s21
      %s24 = sshll.u32 %s0, 4
      %s25 = int_to_ptr.vmem [resolvable:$true] %s24
      %27 = dma.vmem_to_smem %s25, 16, [#allocation3], [#allocation6]
    $region5: #{tpu_custom_call.1} parent=1 // pred_fallthru
      _
    // Predicated region
    $region6: #{tpu_custom_call.1} parent=1 // pred_check
      _
    $region7: #{tpu_custom_call.1} parent=1 // pred_check_branch
      %29 = sbr.rel (0) target = $region9
    $region8: #{tpu_custom_call.1} parent=1 // pred_region
      %s31 = ssub.s32 16, 16
      %32 = vsyncadd [#allocation8], %s31
      %s34 = sshll.u32 %s1, 4
      %s35 = int_to_ptr.vmem [resolvable:$true] %s34
      %37 = dma.vmem_to_smem %s35, 16, [#allocation7], [#allocation8]
    $region9: #{tpu_custom_call.1} parent=1 // pred_fallthru
      _
    // Predicated region
    $region10: #{tpu_custom_call.1} parent=1 // pred_check
      _
    $region11: #{tpu_custom_call.1} parent=1 // pred_check_branch
      %39 = sbr.rel (0) target = $region13
    $region12: #{tpu_custom_call.1} parent=1 // pred_region
      %s41 = ssub.s32 16, 16
      %42 = vsyncadd [#allocation8], %s41
      %s44 = sshll.u32 %s2, 4
      %s45 = int_to_ptr.vmem [resolvable:$true] %s44
      %47 = dma.vmem_to_smem %s45, 16, [#allocation9], [#allocation8]
    $region13: #{tpu_custom_call.1} parent=1 // pred_fallthru
      _
    // Predicated region
    $region14: #{tpu_custom_call.1} parent=1 // pred_check
      _
    $region15: #{tpu_custom_call.1} parent=1 // pred_check_branch
      %49 = sbr.rel (0) target = $region17
    $region16: #{tpu_custom_call.1} parent=1 // pred_region
      _
    $region17: #{tpu_custom_call.1} parent=1 // pred_fallthru
      _
    // Predicated region
    $region18: #{tpu_custom_call.1} parent=1 // pred_check
      _
    $region19: #{tpu_custom_call.1} parent=1 // pred_check_branch
      %51 = sbr.rel (0) target = $region21
    $region20: #{tpu_custom_call.1} parent=1 // pred_region
      %s53 = ssub.s32 256, 256
      %54 = vsyncadd [#allocation4], %s53
      %s55 = sshll.u32 [#allocation10], 4
      %s56 = int_to_ptr.vmem [resolvable:$true] %s55
      %61 = dma.hbm_to_vmem [thread:$0]  %s4, 256, %s56, [#allocation4], 128, 128, 8
    $region21: #{tpu_custom_call.1} parent=1 // pred_fallthru
      _
    // Predicated region
    $region22: #{tpu_custom_call.1} parent=1 // pred_check
      _
    $region23: #{tpu_custom_call.1} parent=1 // pred_check_branch
      %63 = sbr.rel (0) target = $region25
    $region24: #{tpu_custom_call.1} parent=1 // pred_region
      %s65 = ssub.s32 256, 256
      %66 = vsyncadd [#allocation12], %s65
      %s67 = sshll.u32 [#allocation11], 4
      %s68 = int_to_ptr.vmem [resolvable:$true] %s67
      %73 = dma.hbm_to_vmem [thread:$0]  %s5, 256, %s68, [#allocation12], 128, 128, 8
    $region25: #{tpu_custom_call.1} parent=1 // pred_fallthru
      _
    // Predicated region
    $region26: #{tpu_custom_call.1} parent=1 // pred_check
      _
    $region27: #{tpu_custom_call.1} parent=1 // pred_check_branch
      %75 = sbr.rel (0) target = $region29
    $region28: #{tpu_custom_call.1} parent=1 // pred_region
      %s77 = ssub.s32 256, 256
      %78 = vsyncadd [#allocation12], %s77
      %s79 = sshll.u32 [#allocation13], 4
      %s80 = int_to_ptr.vmem [resolvable:$true] %s79
      %85 = dma.hbm_to_vmem [thread:$0]  %s6, 256, %s80, [#allocation12], 128, 128, 8
    $region29: #{tpu_custom_call.1} parent=1 // pred_fallthru
      _
    // Predicated region
    $region30: #{tpu_custom_call.1} parent=1 // pred_check
      _
    $region31: #{tpu_custom_call.1} parent=1 // pred_check_branch
      %87 = sbr.rel (0) target = $region33
    $region32: #{tpu_custom_call.1} parent=1 // pred_region
      %88 = dma.done [#allocation6], 16
    $region33: #{tpu_custom_call.1} parent=1 // pred_fallthru
      _
    // Predicated region
    $region34: #{tpu_custom_call.1} parent=1 // pred_check
      _
    $region35: #{tpu_custom_call.1} parent=1 // pred_check_branch
      %90 = sbr.rel (0) target = $region37
    $region36: #{tpu_custom_call.1} parent=1 // pred_region
      %91 = dma.done [#allocation8], 16
    $region37: #{tpu_custom_call.1} parent=1 // pred_fallthru
      _
    // Predicated region
    $region38: #{tpu_custom_call.1} parent=1 // pred_check
      _
    $region39: #{tpu_custom_call.1} parent=1 // pred_check_branch
      %93 = sbr.rel (0) target = $region41
    $region40: #{tpu_custom_call.1} parent=1 // pred_region
      %94 = dma.done [#allocation8], 16
    $region41: #{tpu_custom_call.1} parent=1 // pred_fallthru
      _
    // Predicated region
    $region42: #{tpu_custom_call.1} parent=1 // pred_check
      _
    $region43: #{tpu_custom_call.1} parent=1 // pred_check_branch
      %96 = sbr.rel (0) target = $region45
    $region44: #{tpu_custom_call.1} parent=1 // pred_region
      %97 = dma.done [#allocation4], 256
    $region45: #{tpu_custom_call.1} parent=1 // pred_fallthru
      _
    // Predicated region
    $region46: #{tpu_custom_call.1} parent=1 // pred_check
      _
    $region47: #{tpu_custom_call.1} parent=1 // pred_check_branch
      %99 = sbr.rel (0) target = $region49
    $region48: #{tpu_custom_call.1} parent=1 // pred_region
      %100 = dma.done [#allocation12], 256
    $region49: #{tpu_custom_call.1} parent=1 // pred_fallthru
      _
    // Predicated region
    $region50: #{tpu_custom_call.1} parent=1 // pred_check
      _
    $region51: #{tpu_custom_call.1} parent=1 // pred_check_branch
      %102 = sbr.rel (0) target = $region53
    $region52: #{tpu_custom_call.1} parent=1 // pred_region
      %103 = dma.done [#allocation12], 256
    $region53: #{tpu_custom_call.1} parent=1 // pred_fallthru
      _
    %104 = sfence
    %s105 = sld [smem:[#allocation3]]
    %s106 = sld [smem:[#allocation3 + $0x1]]
    %s107 = sld [smem:[#allocation3 + $0x2]]
    %s108 = sld [smem:[#allocation3 + $0x3]]
    %s109 = sld [smem:[#allocation3 + $0x4]]
    %s110 = sld [smem:[#allocation3 + $0x5]]
    %s111 = sld [smem:[#allocation3 + $0x6]]
    %s112 = sld [smem:[#allocation3 + $0x7]]
    %s113 = sld [smem:[#allocation3 + $0x8]]
    %s114 = sld [smem:[#allocation3 + $0x9]]
    %s115 = sld [smem:[#allocation3 + $0xa]]
    %s116 = sld [smem:[#allocation3 + $0xb]]
    %s117 = sld [smem:[#allocation3 + $0xc]]
    %s118 = sld [smem:[#allocation3 + $0xd]]
    %s119 = sld [smem:[#allocation3 + $0xe]]
    %s120 = sld [smem:[#allocation3 + $0xf]]
    %s121 = sld [smem:[#allocation3 + $0x10]]
    %s122 = sld [smem:[#allocation3 + $0x11]]
    %s123 = sld [smem:[#allocation3 + $0x12]]
    %s124 = sld [smem:[#allocation3 + $0x13]]
    %s125 = sld [smem:[#allocation3 + $0x14]]
    %s126 = sld [smem:[#allocation3 + $0x15]]
    %s127 = sld [smem:[#allocation3 + $0x16]]
    %s128 = sld [smem:[#allocation3 + $0x17]]
    %s129 = sld [smem:[#allocation3 + $0x18]]
    %s130 = sld [smem:[#allocation3 + $0x19]]
    %s131 = sld [smem:[#allocation3 + $0x1a]]
    %s132 = sld [smem:[#allocation3 + $0x1b]]
    %s133 = sld [smem:[#allocation3 + $0x1c]]
    %s134 = sld [smem:[#allocation3 + $0x1d]]
    %s135 = sld [smem:[#allocation3 + $0x1e]]
    %s136 = sld [smem:[#allocation3 + $0x1f]]
    %s137 = sld [smem:[#allocation3 + $0x20]]
    %s138 = sld [smem:[#allocation3 + $0x21]]
    %s139 = sld [smem:[#allocation3 + $0x22]]
    %s140 = sld [smem:[#allocation3 + $0x23]]
    %s141 = sld [smem:[#allocation7]]
    %s142 = sld [smem:[#allocation7 + $0x1]]
    %s143 = sld [smem:[#allocation7 + $0x2]]
    %s144 = sld [smem:[#allocation7 + $0x3]]
    %s145 = sld [smem:[#allocation7 + $0x4]]
    %s146 = sld [smem:[#allocation7 + $0x5]]
    %s147 = sld [smem:[#allocation7 + $0x6]]
    %s148 = sld [smem:[#allocation7 + $0x7]]
    %s149 = sld [smem:[#allocation7 + $0x8]]
    %s150 = sld [smem:[#allocation7 + $0x9]]
    %s151 = sld [smem:[#allocation7 + $0xa]]
    %s152 = sld [smem:[#allocation7 + $0xb]]
    %s153 = sld [smem:[#allocation9]]
    %s154 = sld [smem:[#allocation9 + $0x1]]
    %s155 = sld [smem:[#allocation9 + $0x2]]
    %s156 = sld [smem:[#allocation9 + $0x3]]
    %s157 = sld [smem:[#allocation9 + $0x4]]
    %s158 = sld [smem:[#allocation9 + $0x5]]
    %s159 = sld [smem:[#allocation9 + $0x6]]
    %s160 = sld [smem:[#allocation9 + $0x7]]
    %s161 = sld [smem:[#allocation9 + $0x8]]
    %s162 = sld [smem:[#allocation9 + $0x9]]
    %s163 = sld [smem:[#allocation9 + $0xa]]
    %s164 = sld [smem:[#allocation9 + $0xb]]
    %s165 = sld [smem:[#allocation2]]
    %v166 = vld [vmem:[#allocation10] sm:$0xff]
    %v167 = vld [vmem:[#allocation10 + $0x8] sm:$0xff]
    %v168 = vld [vmem:[#allocation11] sm:$0xff]
    %v169 = vld [vmem:[#allocation11 + $0x8] sm:$0xff]
    %v170 = vld [vmem:[#allocation13] sm:$0xff]
    %v171 = vld [vmem:[#allocation13 + $0x8] sm:$0xff]
    %v172 = vstv %s165
    %v173 = vstv %s105
    %v174 = vmul.f32 %v166, %v173
    %v175 = vmul.f32 %v167, %v173
    %v176 = vstv %s106
    %v177 = vmul.f32 %v168, %v176
    %v178 = vmul.f32 %v169, %v176
    %v179 = vadd.f32 %v174, %v177
    %v180 = vadd.f32 %v175, %v178
    %v181 = vstv %s107
    %v182 = vmul.f32 %v170, %v181
    %v183 = vmul.f32 %v171, %v181
    %v184 = vadd.f32 %v179, %v182
    %v185 = vadd.f32 %v180, %v183
    %v186 = vstv %s141
    %v187 = vadd.f32 %v184, %v186
    %v188 = vadd.f32 %v185, %v186
    %v189 = verf.f32.pop %v187
    %v190 = verf.f32.pop %v188
    %v191 = vadd.f32 %v189, 1.0
    %v192 = vadd.f32 %v190, 1.0
    %v193 = vmul.f32 %v187, %v191
    %v194 = vmul.f32 %v188, %v192
    %v195 = vstv %s153
    %v196 = vmul.f32 %v195, %v193
    %v197 = vmul.f32 %v195, %v194
    %v198 = vadd.f32 %v172, %v196
    %v199 = vadd.f32 %v172, %v197
    %v200 = vstv %s108
    %v201 = vmul.f32 %v166, %v200
    %v202 = vmul.f32 %v167, %v200
    %v203 = vstv %s109
    %v204 = vmul.f32 %v168, %v203
    %v205 = vmul.f32 %v169, %v203
    %v206 = vadd.f32 %v201, %v204
    %v207 = vadd.f32 %v202, %v205
    %v208 = vstv %s110
    %v209 = vmul.f32 %v170, %v208
    %v210 = vmul.f32 %v171, %v208
    %v211 = vadd.f32 %v206, %v209
    %v212 = vadd.f32 %v207, %v210
    %v213 = vstv %s142
    %v214 = vadd.f32 %v211, %v213
    %v215 = vadd.f32 %v212, %v213
    %v216 = verf.f32.pop %v214
    %v217 = verf.f32.pop %v215
    %v218 = vadd.f32 %v216, 1.0
    %v219 = vadd.f32 %v217, 1.0
    %v220 = vmul.f32 %v214, %v218
    %v221 = vmul.f32 %v215, %v219
    %v222 = vstv %s154
    %v223 = vmul.f32 %v222, %v220
    %v224 = vmul.f32 %v222, %v221
    %v225 = vadd.f32 %v198, %v223
    %v226 = vadd.f32 %v199, %v224
    %v227 = vstv %s111
    %v228 = vmul.f32 %v166, %v227
    %v229 = vmul.f32 %v167, %v227
    %v230 = vstv %s112
    %v231 = vmul.f32 %v168, %v230
    %v232 = vmul.f32 %v169, %v230
    %v233 = vadd.f32 %v228, %v231
    %v234 = vadd.f32 %v229, %v232
    %v235 = vstv %s113
    %v236 = vmul.f32 %v170, %v235
    %v237 = vmul.f32 %v171, %v235
    %v238 = vadd.f32 %v233, %v236
    %v239 = vadd.f32 %v234, %v237
    %v240 = vstv %s143
    %v241 = vadd.f32 %v238, %v240
    %v242 = vadd.f32 %v239, %v240
    %v243 = verf.f32.pop %v241
    %v244 = verf.f32.pop %v242
    %v245 = vadd.f32 %v243, 1.0
    %v246 = vadd.f32 %v244, 1.0
    %v247 = vmul.f32 %v241, %v245
    %v248 = vmul.f32 %v242, %v246
    %v249 = vstv %s155
    %v250 = vmul.f32 %v249, %v247
    %v251 = vmul.f32 %v249, %v248
    %v252 = vadd.f32 %v225, %v250
    %v253 = vadd.f32 %v226, %v251
    %v254 = vstv %s114
    %v255 = vmul.f32 %v166, %v254
    %v256 = vmul.f32 %v167, %v254
    %v257 = vstv %s115
    %v258 = vmul.f32 %v168, %v257
    %v259 = vmul.f32 %v169, %v257
    %v260 = vadd.f32 %v255, %v258
    %v261 = vadd.f32 %v256, %v259
    %v262 = vstv %s116
    %v263 = vmul.f32 %v170, %v262
    %v264 = vmul.f32 %v171, %v262
    %v265 = vadd.f32 %v260, %v263
    %v266 = vadd.f32 %v261, %v264
    %v267 = vstv %s144
    %v268 = vadd.f32 %v265, %v267
    %v269 = vadd.f32 %v266, %v267
    %v270 = verf.f32.pop %v268
    %v271 = verf.f32.pop %v269
    %v272 = vadd.f32 %v270, 1.0
    %v273 = vadd.f32 %v271, 1.0
    %v274 = vmul.f32 %v268, %v272
    %v275 = vmul.f32 %v269, %v273
    %v276 = vstv %s156
    %v277 = vmul.f32 %v276, %v274
    %v278 = vmul.f32 %v276, %v275
    %v279 = vadd.f32 %v252, %v277
    %v280 = vadd.f32 %v253, %v278
    %v281 = vstv %s117
    %v282 = vmul.f32 %v166, %v281
    %v283 = vmul.f32 %v167, %v281
    %v284 = vstv %s118
    %v285 = vmul.f32 %v168, %v284
    %v286 = vmul.f32 %v169, %v284
    %v287 = vadd.f32 %v282, %v285
    %v288 = vadd.f32 %v283, %v286
    %v289 = vstv %s119
    %v290 = vmul.f32 %v170, %v289
    %v291 = vmul.f32 %v171, %v289
    %v292 = vadd.f32 %v287, %v290
    %v293 = vadd.f32 %v288, %v291
    %v294 = vstv %s145
    %v295 = vadd.f32 %v292, %v294
    %v296 = vadd.f32 %v293, %v294
    %v297 = verf.f32.pop %v295
    %v298 = verf.f32.pop %v296
    %v299 = vadd.f32 %v297, 1.0
    %v300 = vadd.f32 %v298, 1.0
    %v301 = vmul.f32 %v295, %v299
    %v302 = vmul.f32 %v296, %v300
    %v303 = vstv %s157
    %v304 = vmul.f32 %v303, %v301
    %v305 = vmul.f32 %v303, %v302
    %v306 = vadd.f32 %v279, %v304
    %v307 = vadd.f32 %v280, %v305
    %v308 = vstv %s120
    %v309 = vmul.f32 %v166, %v308
    %v310 = vmul.f32 %v167, %v308
    %v311 = vstv %s121
    %v312 = vmul.f32 %v168, %v311
    %v313 = vmul.f32 %v169, %v311
    %v314 = vadd.f32 %v309, %v312
    %v315 = vadd.f32 %v310, %v313
    %v316 = vstv %s122
    %v317 = vmul.f32 %v170, %v316
    %v318 = vmul.f32 %v171, %v316
    %v319 = vadd.f32 %v314, %v317
    %v320 = vadd.f32 %v315, %v318
    %v321 = vstv %s146
    %v322 = vadd.f32 %v319, %v321
    %v323 = vadd.f32 %v320, %v321
    %v324 = verf.f32.pop %v322
    %v325 = verf.f32.pop %v323
    %v326 = vadd.f32 %v324, 1.0
    %v327 = vadd.f32 %v325, 1.0
    %v328 = vmul.f32 %v322, %v326
    %v329 = vmul.f32 %v323, %v327
    %v330 = vstv %s158
    %v331 = vmul.f32 %v330, %v328
    %v332 = vmul.f32 %v330, %v329
    %v333 = vadd.f32 %v306, %v331
    %v334 = vadd.f32 %v307, %v332
    %v335 = vstv %s123
    %v336 = vmul.f32 %v166, %v335
    %v337 = vmul.f32 %v167, %v335
    %v338 = vstv %s124
    %v339 = vmul.f32 %v168, %v338
    %v340 = vmul.f32 %v169, %v338
    %v341 = vadd.f32 %v336, %v339
    %v342 = vadd.f32 %v337, %v340
    %v343 = vstv %s125
    %v344 = vmul.f32 %v170, %v343
    %v345 = vmul.f32 %v171, %v343
    %v346 = vadd.f32 %v341, %v344
    %v347 = vadd.f32 %v342, %v345
    %v348 = vstv %s147
    %v349 = vadd.f32 %v346, %v348
    %v350 = vadd.f32 %v347, %v348
    %v351 = verf.f32.pop %v349
    %v352 = verf.f32.pop %v350
    %v353 = vadd.f32 %v351, 1.0
    %v354 = vadd.f32 %v352, 1.0
    %v355 = vmul.f32 %v349, %v353
    %v356 = vmul.f32 %v350, %v354
    %v357 = vstv %s159
    %v358 = vmul.f32 %v357, %v355
    %v359 = vmul.f32 %v357, %v356
    %v360 = vadd.f32 %v333, %v358
    %v361 = vadd.f32 %v334, %v359
    %v362 = vstv %s126
    %v363 = vmul.f32 %v166, %v362
    %v364 = vmul.f32 %v167, %v362
    %v365 = vstv %s127
    %v366 = vmul.f32 %v168, %v365
    %v367 = vmul.f32 %v169, %v365
    %v368 = vadd.f32 %v363, %v366
    %v369 = vadd.f32 %v364, %v367
    %v370 = vstv %s128
    %v371 = vmul.f32 %v170, %v370
    %v372 = vmul.f32 %v171, %v370
    %v373 = vadd.f32 %v368, %v371
    %v374 = vadd.f32 %v369, %v372
    %v375 = vstv %s148
    %v376 = vadd.f32 %v373, %v375
    %v377 = vadd.f32 %v374, %v375
    %v378 = verf.f32.pop %v376
    %v379 = verf.f32.pop %v377
    %v380 = vadd.f32 %v378, 1.0
    %v381 = vadd.f32 %v379, 1.0
    %v382 = vmul.f32 %v376, %v380
    %v383 = vmul.f32 %v377, %v381
    %v384 = vstv %s160
    %v385 = vmul.f32 %v384, %v382
    %v386 = vmul.f32 %v384, %v383
    %v387 = vadd.f32 %v360, %v385
    %v388 = vadd.f32 %v361, %v386
    %v389 = vstv %s129
    %v390 = vmul.f32 %v166, %v389
    %v391 = vmul.f32 %v167, %v389
    %v392 = vstv %s130
    %v393 = vmul.f32 %v168, %v392
    %v394 = vmul.f32 %v169, %v392
    %v395 = vadd.f32 %v390, %v393
    %v396 = vadd.f32 %v391, %v394
    %v397 = vstv %s131
    %v398 = vmul.f32 %v170, %v397
    %v399 = vmul.f32 %v171, %v397
    %v400 = vadd.f32 %v395, %v398
    %v401 = vadd.f32 %v396, %v399
    %v402 = vstv %s149
    %v403 = vadd.f32 %v400, %v402
    %v404 = vadd.f32 %v401, %v402
    %v405 = verf.f32.pop %v403
    %v406 = verf.f32.pop %v404
    %v407 = vadd.f32 %v405, 1.0
    %v408 = vadd.f32 %v406, 1.0
    %v409 = vmul.f32 %v403, %v407
    %v410 = vmul.f32 %v404, %v408
    %v411 = vstv %s161
    %v412 = vmul.f32 %v411, %v409
    %v413 = vmul.f32 %v411, %v410
    %v414 = vadd.f32 %v387, %v412
    %v415 = vadd.f32 %v388, %v413
    %v416 = vstv %s132
    %v417 = vmul.f32 %v166, %v416
    %v418 = vmul.f32 %v167, %v416
    %v419 = vstv %s133
    %v420 = vmul.f32 %v168, %v419
    %v421 = vmul.f32 %v169, %v419
    %v422 = vadd.f32 %v417, %v420
    %v423 = vadd.f32 %v418, %v421
    %v424 = vstv %s134
    %v425 = vmul.f32 %v170, %v424
    %v426 = vmul.f32 %v171, %v424
    %v427 = vadd.f32 %v422, %v425
    %v428 = vadd.f32 %v423, %v426
    %v429 = vstv %s150
    %v430 = vadd.f32 %v427, %v429
    %v431 = vadd.f32 %v428, %v429
    %v432 = verf.f32.pop %v430
    %v433 = verf.f32.pop %v431
    %v434 = vadd.f32 %v432, 1.0
    %v435 = vadd.f32 %v433, 1.0
    %v436 = vmul.f32 %v430, %v434
    %v437 = vmul.f32 %v431, %v435
    %v438 = vstv %s162
    %v439 = vmul.f32 %v438, %v436
    %v440 = vmul.f32 %v438, %v437
    %v441 = vadd.f32 %v414, %v439
    %v442 = vadd.f32 %v415, %v440
    %v443 = vstv %s135
    %v444 = vmul.f32 %v166, %v443
    %v445 = vmul.f32 %v167, %v443
    %v446 = vstv %s136
    %v447 = vmul.f32 %v168, %v446
    %v448 = vmul.f32 %v169, %v446
    %v449 = vadd.f32 %v444, %v447
    %v450 = vadd.f32 %v445, %v448
    %v451 = vstv %s137
    %v452 = vmul.f32 %v170, %v451
    %v453 = vmul.f32 %v171, %v451
    %v454 = vadd.f32 %v449, %v452
    %v455 = vadd.f32 %v450, %v453
    %v456 = vstv %s151
    %v457 = vadd.f32 %v454, %v456
    %v458 = vadd.f32 %v455, %v456
    %v459 = verf.f32.pop %v457
    %v460 = verf.f32.pop %v458
    %v461 = vadd.f32 %v459, 1.0
    %v462 = vadd.f32 %v460, 1.0
    %v463 = vmul.f32 %v457, %v461
    %v464 = vmul.f32 %v458, %v462
    %v465 = vstv %s163
    %v466 = vmul.f32 %v465, %v463
    %v467 = vmul.f32 %v465, %v464
    %v468 = vadd.f32 %v441, %v466
    %v469 = vadd.f32 %v442, %v467
    %v470 = vstv %s138
    %v471 = vmul.f32 %v166, %v470
    %v472 = vmul.f32 %v167, %v470
    %v473 = vstv %s139
    %v474 = vmul.f32 %v168, %v473
    %v475 = vmul.f32 %v169, %v473
    %v476 = vadd.f32 %v471, %v474
    %v477 = vadd.f32 %v472, %v475
    %v478 = vstv %s140
    %v479 = vmul.f32 %v170, %v478
    %v480 = vmul.f32 %v171, %v478
    %v481 = vadd.f32 %v476, %v479
    %v482 = vadd.f32 %v477, %v480
    %v483 = vstv %s152
    %v484 = vadd.f32 %v481, %v483
    %v485 = vadd.f32 %v482, %v483
    %v486 = verf.f32.pop %v484
    %v487 = verf.f32.pop %v485
    %v488 = vadd.f32 %v486, 1.0
    %v489 = vadd.f32 %v487, 1.0
    %v490 = vmul.f32 %v484, %v488
    %v491 = vmul.f32 %v485, %v489
    %v492 = vstv %s164
    %v493 = vmul.f32 %v492, %v490
    %v494 = vmul.f32 %v492, %v491
    %v495 = vadd.f32 %v468, %v493
    %v496 = vadd.f32 %v469, %v494
    %497 = vst [vmem:[#allocation14] sm:$0xff] %v495
    %498 = vst [vmem:[#allocation14 + $0x8] sm:$0xff] %v496
    // Predicated region
    $region54: #{tpu_custom_call.1} parent=1 // pred_check
      _
    $region55: #{tpu_custom_call.1} parent=1 // pred_check_branch
      %500 = sbr.rel (0) target = $region57
    $region56: #{tpu_custom_call.1} parent=1 // pred_region
      %s502 = ssub.s32 256, 256
      %503 = vsyncadd [#allocation5], %s502
      %s504 = sshll.u32 [#allocation14], 4
      %s505 = int_to_ptr.vmem [resolvable:$true] %s504
      %510 = dma.vmem_to_hbm [thread:$0]  %s505, 256, %s7, [#allocation5], 128, 128, 8
    $region57: #{tpu_custom_call.1} parent=1 // pred_fallthru
      _
    // Predicated region
    $region58: #{tpu_custom_call.1} parent=1 // pred_check
      _
    $region59: #{tpu_custom_call.1} parent=1 // pred_check_branch
      %512 = sbr.rel (0) target = $region61
    $region60: #{tpu_custom_call.1} parent=1 // pred_region
      %513 = dma.done [#allocation5], 256
    $region61: #{tpu_custom_call.1} parent=1 // pred_fallthru
      _
    %514 = vsyncpa [#allocation4], 1
    %515 = vsyncpa [#allocation12], 1
    %516 = vsyncpa [#allocation5], 1
    %517 = vsyncpa [#allocation6], 1
    %518 = vsyncpa [#allocation8], 1

</llo_original>
